<compile_context>
chip_gen: v5e
topology: v5e:2x2
jax: 0.10.0
libtpu: 0.0.40
codegen_flags: <defaults>
</compile_context>

<pallas_src>
import jax
import jax.numpy as jnp
from jax.experimental import pallas as pl
from jax.experimental.pallas import tpu as pltpu


# ----------------------------------------------------------------------------- kernels

def _ca_single_pass_kernel(x_ref, w1t_ref, b1_ref, w2_ref, b2_ref, out_ref):
    # x_ref:   (Nb, C, HW)  batch tile; channels on sublanes, pixels on lanes
    # w1t_ref: (C, Cr)      squeeze 1x1-conv weight, transposed, pre-scaled by 1/(H*W)
    # b1_ref:  (1, Cr)
    # w2_ref:  (C, Cr)      excite 1x1-conv weight
    # b2_ref:  (C, 1)
    # out_ref: (Nb, C, HW)  same dtype as x
    # Global average pool, accumulated in f32 (1/(H*W) folded into w1t).
    pooled = jnp.sum(x_ref[...].astype(jnp.float32), axis=-1, keepdims=True)  # (Nb, C, 1)

    # Squeeze FC + ReLU: broadcast-multiply + sublane reduce (keeps the tiny FC off MXU).
    h = jnp.sum(pooled * w1t_ref[...][None, :, :], axis=1, keepdims=True) + b1_ref[...]
    z = jnp.maximum(h, 0.0)                                                   # (Nb, 1, Cr)

    # Excite FC + sigmoid: broadcast-multiply + lane reduce.
    g = jnp.sum(w2_ref[...][None, :, :] * z, axis=-1, keepdims=True) + b2_ref[...]
    gate = jax.nn.sigmoid(g)                                                  # (Nb, C, 1)

    # Re-read x from VMEM for the gated writeback (keeps vreg pressure low);
    # lane-broadcast multiply, single dense store in the output dtype.
    out_ref[...] = (x_ref[...].astype(jnp.float32) * gate).astype(out_ref.dtype)


def _ca_pool_kernel(x_ref, w1t_ref, b1_ref, w2_ref, b2_ref, gate_ref, acc_ref):
    # Two-pass variant, pass 1: pooled sum over HW tiles + tiny MLP -> gate (C, 1).
    # x_ref: (1, C, T)   gate_ref: (1, C, 1)   acc_ref: (C, 1) f32 VMEM scratch
    t = pl.program_id(1)

    @pl.when(t == 0)
    def _():
        acc_ref[...] = jnp.zeros_like(acc_ref)

    acc_ref[...] += jnp.sum(x_ref[0].astype(jnp.float32), axis=-1, keepdims=True)

    @pl.when(t == pl.num_programs(1) - 1)
    def _():
        pooled = acc_ref[...]                                                 # (C, 1)
        h = jnp.sum(pooled * w1t_ref[...], axis=0, keepdims=True) + b1_ref[...]
        z = jnp.maximum(h, 0.0)                                               # (1, Cr)
        g = jnp.sum(w2_ref[...] * z, axis=-1, keepdims=True) + b2_ref[...]    # (C, 1)
        gate_ref[0] = jax.nn.sigmoid(g)


def _ca_scale_kernel(x_ref, gate_ref, out_ref):
    # Two-pass variant, pass 2: per-channel gating of one (1, C, T) tile.
    out_ref[...] = (x_ref[...].astype(jnp.float32) * gate_ref[...]).astype(out_ref.dtype)


# ----------------------------------------------------------------------------- helpers

def _vmem_budget_bytes():
    """~3/4 of physical VMEM; conservative fallback that is safe on v5e/v6e/v7x."""
    try:
        cap = getattr(pltpu.get_tpu_info(), "vmem_capacity_bytes", None)
        if cap:
            return int(cap) * 3 // 4
    except Exception:
        pass
    return 48 << 20


def _pick_batch_tile(n, img_bytes, budget_bytes, target_bytes=1 << 20):
    """Largest divisor of n whose (in+out, double-buffered) block fits the budget,
    stopping once a block reaches ~target_bytes (grid-step overhead amortized)."""
    best = 1
    for nb in range(1, n + 1):
        if n % nb:
            continue
        if 4 * nb * img_bytes > budget_bytes:
            break
        best = nb
        if nb * img_bytes >= target_bytes:
            break
    return best


def _pick_hw_tile(hw, c, itemsize, target_bytes=1 << 20):
    """Largest multiple-of-128 divisor of hw giving a ~target-sized (C, T) block."""
    best = None
    for t in range(128, hw + 1, 128):
        if hw % t:
            continue
        if best is None or c * t * itemsize <= target_bytes:
            best = t
        if c * t * itemsize >= target_bytes:
            break
    return best if best is not None else hw


# ----------------------------------------------------------------------------- wrapper

def ca_layer(x_nchw, w1_oihw, b1, w2_oihw, b2, *, force_two_pass=False, hw_tile=None):
    """CALayer forward.

    x_nchw:  (N, C, H, W) any float dtype (output keeps this dtype)
    w1_oihw: (C//r, C, 1, 1), b1: (C//r,)   -- squeeze 1x1 conv
    w2_oihw: (C, C//r, 1, 1), b2: (C,)      -- excite 1x1 conv
    """
    N, C, H, W = x_nchw.shape
    Cr = w1_oihw.shape[0]
    HW = H * W
    out_dtype = x_nchw.dtype

    x = x_nchw.reshape(N, C, HW)                       # free view, native dtype on the wire

    # Tiny FC params in f32; the average-pool 1/(H*W) is folded into the squeeze weight.
    w1t = jnp.transpose(w1_oihw.reshape(Cr, C)).astype(jnp.float32) * (1.0 / HW)
    b1m = b1.reshape(1, Cr).astype(jnp.float32)
    w2m = w2_oihw.reshape(C, Cr).astype(jnp.float32)
    b2m = b2.reshape(C, 1).astype(jnp.float32)

    itemsize = x_nchw.dtype.itemsize
    img_bytes = C * HW * itemsize
    budget = _vmem_budget_bytes()

    single_pass = (not force_two_pass) and (4 * img_bytes <= budget)

    if single_pass:
        nb = _pick_batch_tile(N, img_bytes, budget)
        need = 4 * nb * img_bytes + (2 * C * Cr + Cr + C) * 4
        vmem_limit = min(need + (4 << 20), budget) if need > (16 << 20) else None
        out = pl.pallas_call(
            _ca_single_pass_kernel,
            out_shape=jax.ShapeDtypeStruct((N, C, HW), out_dtype),
            grid_spec=pltpu.PrefetchScalarGridSpec(
                num_scalar_prefetch=0,
                grid=(N // nb,),
                in_specs=[
                    pl.BlockSpec((nb, C, HW), lambda n: (n, 0, 0)),
                    pl.BlockSpec((C, Cr), lambda n: (0, 0)),
                    pl.BlockSpec((1, Cr), lambda n: (0, 0)),
                    pl.BlockSpec((C, Cr), lambda n: (0, 0)),
                    pl.BlockSpec((C, 1), lambda n: (0, 0)),
                ],
                out_specs=pl.BlockSpec((nb, C, HW), lambda n: (n, 0, 0)),
            ),
            compiler_params=pltpu.CompilerParams(
                dimension_semantics=("parallel",),
                vmem_limit_bytes=vmem_limit),
        )(x, w1t, b1m, w2m, b2m)
        return out.reshape(N, C, H, W)

    # ------------------- two-pass path: pool pass + scale pass -------------------
    # TODO(synk): for extreme channel counts where even a (1, C, 128) tile overflows
    # VMEM, a further channel-tiling level would be needed in both passes.
    T = hw_tile if hw_tile is not None else _pick_hw_tile(HW, C, itemsize)
    assert HW % T == 0, "HW tile must divide H*W"
    n_t = HW // T

    gates = pl.pallas_call(
        _ca_pool_kernel,
        out_shape=jax.ShapeDtypeStruct((N, C, 1), jnp.float32),
        grid_spec=pltpu.PrefetchScalarGridSpec(
            num_scalar_prefetch=0,
            grid=(N, n_t),
            in_specs=[
                pl.BlockSpec((1, C, T), lambda n, t: (n, 0, t)),
                pl.BlockSpec((C, Cr), lambda n, t: (0, 0)),
                pl.BlockSpec((1, Cr), lambda n, t: (0, 0)),
                pl.BlockSpec((C, Cr), lambda n, t: (0, 0)),
                pl.BlockSpec((C, 1), lambda n, t: (0, 0)),
            ],
            out_specs=pl.BlockSpec((1, C, 1), lambda n, t: (n, 0, 0)),
            scratch_shapes=[pltpu.VMEM((C, 1), jnp.float32)],
        ),
        compiler_params=pltpu.CompilerParams(
            dimension_semantics=("parallel", "arbitrary")),
    )(x, w1t, b1m, w2m, b2m)

    out = pl.pallas_call(
        _ca_scale_kernel,
        out_shape=jax.ShapeDtypeStruct((N, C, HW), out_dtype),
        grid_spec=pltpu.PrefetchScalarGridSpec(
            num_scalar_prefetch=0,
            grid=(N, n_t),
            in_specs=[
                pl.BlockSpec((1, C, T), lambda n, t: (n, 0, t)),
                pl.BlockSpec((1, C, 1), lambda n, t: (n, 0, 0)),
            ],
            out_specs=pl.BlockSpec((1, C, T), lambda n, t: (n, 0, t)),
        ),
        compiler_params=pltpu.CompilerParams(
            dimension_semantics=("parallel", "parallel")),
    )(x, gates)
    return out.reshape(N, C, H, W)


# ----------------------------------------------------------------------------- reference

def _reference(x, w1_oihw, b1, w2_oihw, b2):
    N, C, H, W = x.shape
    Cr = w1_oihw.shape[0]
    xf = x.astype(jnp.float32)
    y = jnp.mean(xf, axis=(2, 3))                                            # (N, C)
    z = jnp.maximum(y @ w1_oihw.reshape(Cr, C).astype(jnp.float32).T
                    + b1.astype(jnp.float32), 0.0)                           # (N, Cr)
    g = jax.nn.sigmoid(z @ w2_oihw.reshape(C, Cr).astype(jnp.float32).T
                       + b2.astype(jnp.float32))                             # (N, C)
    return xf * g[:, :, None, None]


if __name__ == "__main__":
    # Small shapes consistent with the module: reduction=16 requires C >= 16.
    N, C, H, W = 2, 32, 16, 16
    reduction = 16
    Cr = C // reduction

    key = jax.random.PRNGKey(0)
    kx, k1, kb1, k2, kb2 = jax.random.split(key, 5)
    x = jax.random.normal(kx, (N, C, H, W), dtype=jnp.float32)
    w1 = jax.random.normal(k1, (Cr, C, 1, 1), dtype=jnp.float32) * 0.2
    b1 = jax.random.normal(kb1, (Cr,), dtype=jnp.float32) * 0.1
    w2 = jax.random.normal(k2, (C, Cr, 1, 1), dtype=jnp.float32) * 0.2
    b2 = jax.random.normal(kb2, (C,), dtype=jnp.float32) * 0.1

    ref = jax.block_until_ready(_reference(x, w1, b1, w2, b2))

    # 1) single-pass (resident-image) path, f32.
    out = jax.block_until_ready(ca_layer(x, w1, b1, w2, b2))
    assert out.shape == (N, C, H, W) and out.dtype == x.dtype
    assert jnp.allclose(out, ref, atol=1e-4, rtol=1e-4), \
        f"single-pass max abs err {jnp.max(jnp.abs(out - ref))}"

    # 2) two-pass (pool + scale) path, f32, HW tiled at 128 (the large-image fallback).
    out2 = jax.block_until_ready(
        ca_layer(x, w1, b1, w2, b2, force_two_pass=True, hw_tile=128))
    assert jnp.allclose(out2, ref, atol=1e-4, rtol=1e-4), \
        f"two-pass max abs err {jnp.max(jnp.abs(out2 - ref))}"

    # 3) native-dtype I/O: bf16 in -> bf16 out (no wrapper upcast pass over HBM).
    xb = x.astype(jnp.bfloat16)
    outb = jax.block_until_ready(ca_layer(xb, w1, b1, w2, b2))
    refb = jax.block_until_ready(_reference(xb, w1, b1, w2, b2))
    assert outb.dtype == jnp.bfloat16
    assert jnp.allclose(outb.astype(jnp.float32), refb, atol=3e-2, rtol=3e-2), \
        f"bf16 max abs err {jnp.max(jnp.abs(outb.astype(jnp.float32) - refb))}"

    print("KERNEL_OK")
</pallas_src>

<mosaic_0001>
module attributes {stable_mosaic.version = 11 : i64} {
  func.func @_ca_single_pass_kernel(%arg0: i32, %arg1: memref<2x32x256xf32, #tpu.memory_space<vmem>>, %arg2: memref<32x2xf32, #tpu.memory_space<vmem>>, %arg3: memref<1x2xf32, #tpu.memory_space<vmem>>, %arg4: memref<32x2xf32, #tpu.memory_space<vmem>>, %arg5: memref<32x1xf32, #tpu.memory_space<vmem>>, %arg6: memref<2x32x256xf32, #tpu.memory_space<vmem>>) attributes {dimension_semantics = [#tpu.dimension_semantics<parallel>], iteration_bounds = array<i64: 1>, scalar_prefetch = 0 : i64, scratch_operands = 0 : i64, tpu.core_type = #tpu.core_type<tc>, window_params = [{transform_indices = @transform_0, window_bounds = array<i64: 2, 32, 256>}, {pipeline_mode = #tpu.pipeline_mode<synchronous>, transform_indices = @transform_1, window_bounds = array<i64: 32, 2>}, {pipeline_mode = #tpu.pipeline_mode<synchronous>, transform_indices = @transform_2, window_bounds = array<i64: 1, 2>}, {pipeline_mode = #tpu.pipeline_mode<synchronous>, transform_indices = @transform_3, window_bounds = array<i64: 32, 2>}, {pipeline_mode = #tpu.pipeline_mode<synchronous>, transform_indices = @transform_4, window_bounds = array<i64: 32, 1>}, {transform_indices = @transform_5, window_bounds = array<i64: 2, 32, 256>}]} {
    %c0 = arith.constant 0 : index
    %c0_0 = arith.constant 0 : index
    %c0_1 = arith.constant 0 : index
    %0 = vector.load %arg1[%c0, %c0_0, %c0_1] : memref<2x32x256xf32, #tpu.memory_space<vmem>>, vector<2x32x256xf32>
    %cst = arith.constant dense<0.000000e+00> : vector<2x32xf32>
    %1 = vector.multi_reduction <add>, %0, %cst [2] : vector<2x32x256xf32> to vector<2x32xf32>
    %2 = vector.shape_cast %1 : vector<2x32xf32> to vector<2x32x1xf32>
    %c0_2 = arith.constant 0 : index
    %c0_3 = arith.constant 0 : index
    %3 = vector.load %arg2[%c0_2, %c0_3] : memref<32x2xf32, #tpu.memory_space<vmem>>, vector<32x2xf32>
    %4 = vector.shape_cast %3 : vector<32x2xf32> to vector<1x32x2xf32>
    %5 = vector.broadcast %2 : vector<2x32x1xf32> to vector<2x32x2xf32>
    %6 = vector.broadcast %4 : vector<1x32x2xf32> to vector<2x32x2xf32>
    %7 = arith.mulf %5, %6 : vector<2x32x2xf32>
    %cst_4 = arith.constant dense<0.000000e+00> : vector<2x2xf32>
    %8 = vector.multi_reduction <add>, %7, %cst_4 [1] : vector<2x32x2xf32> to vector<2x2xf32>
    %9 = vector.shape_cast %8 : vector<2x2xf32> to vector<2x1x2xf32>
    %c0_5 = arith.constant 0 : index
    %c0_6 = arith.constant 0 : index
    %10 = vector.load %arg3[%c0_5, %c0_6] : memref<1x2xf32, #tpu.memory_space<vmem>>, vector<1x2xf32>
    %11 = vector.shape_cast %10 : vector<1x2xf32> to vector<1x1x2xf32>
    %12 = vector.broadcast %11 : vector<1x1x2xf32> to vector<2x1x2xf32>
    %13 = arith.addf %9, %12 : vector<2x1x2xf32>
    %cst_7 = arith.constant 0.000000e+00 : f32
    %14 = vector.broadcast %cst_7 : f32 to vector<2x1x2xf32>
    %15 = arith.maximumf %13, %14 : vector<2x1x2xf32>
    %c0_8 = arith.constant 0 : index
    %c0_9 = arith.constant 0 : index
    %16 = vector.load %arg4[%c0_8, %c0_9] : memref<32x2xf32, #tpu.memory_space<vmem>>, vector<32x2xf32>
    %17 = vector.shape_cast %16 : vector<32x2xf32> to vector<1x32x2xf32>
    %18 = vector.broadcast %17 : vector<1x32x2xf32> to vector<2x32x2xf32>
    %19 = vector.broadcast %15 : vector<2x1x2xf32> to vector<2x32x2xf32>
    %20 = arith.mulf %18, %19 : vector<2x32x2xf32>
    %cst_10 = arith.constant dense<0.000000e+00> : vector<2x32xf32>
    %21 = vector.multi_reduction <add>, %20, %cst_10 [2] : vector<2x32x2xf32> to vector<2x32xf32>
    %22 = vector.shape_cast %21 : vector<2x32xf32> to vector<2x32x1xf32>
    %c0_11 = arith.constant 0 : index
    %c0_12 = arith.constant 0 : index
    %23 = vector.load %arg5[%c0_11, %c0_12] : memref<32x1xf32, #tpu.memory_space<vmem>>, vector<32x1xf32>
    %24 = vector.shape_cast %23 : vector<32x1xf32> to vector<1x32x1xf32>
    %25 = vector.broadcast %24 : vector<1x32x1xf32> to vector<2x32x1xf32>
    %26 = arith.addf %22, %25 : vector<2x32x1xf32>
    %27 = arith.negf %26 : vector<2x32x1xf32>
    %28 = math.exp %27 : vector<2x32x1xf32>
    %cst_13 = arith.constant 1.000000e+00 : f32
    %29 = vector.broadcast %cst_13 : f32 to vector<2x32x1xf32>
    %30 = arith.addf %29, %28 : vector<2x32x1xf32>
    %31 = arith.divf %29, %30 : vector<2x32x1xf32>
    %c0_14 = arith.constant 0 : index
    %c0_15 = arith.constant 0 : index
    %c0_16 = arith.constant 0 : index
    %32 = vector.load %arg1[%c0_14, %c0_15, %c0_16] : memref<2x32x256xf32, #tpu.memory_space<vmem>>, vector<2x32x256xf32>
    %33 = vector.broadcast %31 : vector<2x32x1xf32> to vector<2x32x256xf32>
    %34 = arith.mulf %32, %33 : vector<2x32x256xf32>
    %c0_17 = arith.constant 0 : index
    %c0_18 = arith.constant 0 : index
    %c0_19 = arith.constant 0 : index
    %35 = vector.load %arg6[%c0_17, %c0_18, %c0_19] : memref<2x32x256xf32, #tpu.memory_space<vmem>>, vector<2x32x256xf32>
    tpu.vector_store %arg6[%c0_17, %c0_18, %c0_19], %34 {strides = array<i32>} : memref<2x32x256xf32, #tpu.memory_space<vmem>>, vector<2x32x256xf32>,
    return
  }
  func.func @transform_0(%arg0: i32) -> (i32, i32, i32) {
    %c0_i32 = arith.constant 0 : i32
    %c0_i32_0 = arith.constant 0 : i32
    %c0_i32_1 = arith.constant 0 : i32
    return %arg0, %c0_i32, %c0_i32_0 : i32, i32, i32
  }
  func.func @transform_1(%arg0: i32) -> (i32, i32) {
    %c0_i32 = arith.constant 0 : i32
    %c0_i32_0 = arith.constant 0 : i32
    %c0_i32_1 = arith.constant 0 : i32
    return %c0_i32, %c0_i32_0 : i32, i32
  }
  func.func @transform_2(%arg0: i32) -> (i32, i32) {
    %c0_i32 = arith.constant 0 : i32
    %c0_i32_0 = arith.constant 0 : i32
    %c0_i32_1 = arith.constant 0 : i32
    return %c0_i32, %c0_i32_0 : i32, i32
  }
  func.func @transform_3(%arg0: i32) -> (i32, i32) {
    %c0_i32 = arith.constant 0 : i32
    %c0_i32_0 = arith.constant 0 : i32
    %c0_i32_1 = arith.constant 0 : i32
    return %c0_i32, %c0_i32_0 : i32, i32
  }
  func.func @transform_4(%arg0: i32) -> (i32, i32) {
    %c0_i32 = arith.constant 0 : i32
    %c0_i32_0 = arith.constant 0 : i32
    %c0_i32_1 = arith.constant 0 : i32
    return %c0_i32, %c0_i32_0 : i32, i32
  }
  func.func @transform_5(%arg0: i32) -> (i32, i32, i32) {
    %c0_i32 = arith.constant 0 : i32
    %c0_i32_0 = arith.constant 0 : i32
    %c0_i32_1 = arith.constant 0 : i32
    return %arg0, %c0_i32, %c0_i32_0 : i32, i32, i32
  }
}

</mosaic_0001>

<llo_original>
// kernel: tpu_custom_call.1
$region0: #{tpu_custom_call.1}
  #allocation0 [shape = 'u32[]', space=smem, size = 0x4, offset = 0x4, fixed_abs, tag = 'smem constant byte address 0x4 - core index']
  #allocation1 [shape = 'u32[72,128]{1,0:T(1,128)}', space=vmem, size = 0x9000, scoped, tag = 'internal scratch']
  %s0 = inlined_call_operand.hbm [shape: f32[2,32,256], index: 0, kind: input, shape index: {}]
  %s1 = inlined_call_operand.vmem [shape: f32[32,2], index: 1, kind: input, shape index: {}]
  %s2 = inlined_call_operand.vmem [shape: f32[1,2], index: 2, kind: input, shape index: {}]
  %s3 = inlined_call_operand.vmem [shape: f32[32,2], index: 3, kind: input, shape index: {}]
  %s4 = inlined_call_operand.vmem [shape: f32[32,1], index: 4, kind: input, shape index: {}]
  %s5 = inlined_call_operand.hbm [shape: f32[2,32,256], index: 5, kind: output, shape index: {}]
  %s6 = sld [smem:[#allocation0]]
  $region34: #{tpu_custom_call.1} parent=0
    _
  %s8 = ssub.s32 1, %s6
  %s9 = scalar_select 0, %s8, %s6
  $region1: #{tpu_custom_call.1} parent=0
    #allocation2 [shape = 'u8[65536]{0}', space=vmem, size = 0x10000, scoped, tag = 'input window, operand 0, single buffered']
    #allocation3 [shape = 's32[1]{0}', space=sflag, size = 0x4, scoped, tag = 'scoped memory for tpu_custom_call.1']
    #allocation4 [shape = 's32[1]{0}', space=sflag, size = 0x4, scoped, tag = 'scoped memory for tpu_custom_call.1']
    #allocation5 [shape = 'u8[65536]{0}', space=vmem, size = 0x10000, scoped, tag = 'output window, operand 0, single buffered']
    %10 = vsyncpa [#allocation3], 0
    %11 = vsyncpa [#allocation4], 0
    // Predicated region
    $region2: #{tpu_custom_call.1} parent=1 // pred_check
      _
    $region3: #{tpu_custom_call.1} parent=1 // pred_check_branch
      %13 = sbr.rel (0) target = $region5
    $region4: #{tpu_custom_call.1} parent=1 // pred_region
      %15 = vsyncadd [#allocation3], 0
      %s16 = sshll.u32 %s0, 4
      %s17 = int_to_ptr.hbm [resolvable:$true] %s16
      %s18 = sshll.u32 [#allocation2], 4
      %s19 = int_to_ptr.vmem [resolvable:$true] %s18
      %24 = dma.hbm_to_vmem [thread:$0]  %s17, 2048, %s19, [#allocation3], 256, 256, 16
    $region5: #{tpu_custom_call.1} parent=1 // pred_fallthru
      _
    // Predicated region
    $region6: #{tpu_custom_call.1} parent=1 // pred_check
      _
    $region7: #{tpu_custom_call.1} parent=1 // pred_check_branch
      %26 = sbr.rel (0) target = $region9
    $region8: #{tpu_custom_call.1} parent=1 // pred_region
      _
    $region9: #{tpu_custom_call.1} parent=1 // pred_fallthru
      _
    // Predicated region
    $region10: #{tpu_custom_call.1} parent=1 // pred_check
      _
    $region11: #{tpu_custom_call.1} parent=1 // pred_check_branch
      %28 = sbr.rel (0) target = $region13
    $region12: #{tpu_custom_call.1} parent=1 // pred_region
      _
    $region13: #{tpu_custom_call.1} parent=1 // pred_fallthru
      _
    // Predicated region
    $region14: #{tpu_custom_call.1} parent=1 // pred_check
      _
    $region15: #{tpu_custom_call.1} parent=1 // pred_check_branch
      %30 = sbr.rel (0) target = $region17
    $region16: #{tpu_custom_call.1} parent=1 // pred_region
      _
    $region17: #{tpu_custom_call.1} parent=1 // pred_fallthru
      _
    // Predicated region
    $region18: #{tpu_custom_call.1} parent=1 // pred_check
      _
    $region19: #{tpu_custom_call.1} parent=1 // pred_check_branch
      %32 = sbr.rel (0) target = $region21
    $region20: #{tpu_custom_call.1} parent=1 // pred_region
      _
    $region21: #{tpu_custom_call.1} parent=1 // pred_fallthru
      _
    // Predicated region
    $region22: #{tpu_custom_call.1} parent=1 // pred_check
      _
    $region23: #{tpu_custom_call.1} parent=1 // pred_check_branch
      %34 = sbr.rel (0) target = $region25
    $region24: #{tpu_custom_call.1} parent=1 // pred_region
      %36 = dma.done [#allocation3], 2048
    $region25: #{tpu_custom_call.1} parent=1 // pred_fallthru
      _
    %v37 = vld [vmem:[#allocation2] sm:$0xff]
    %v38 = vld [vmem:[#allocation2 + $0x8] sm:$0xff]
    %v39 = vld [vmem:[#allocation2 + $0x10] sm:$0xff]
    %v40 = vld [vmem:[#allocation2 + $0x18] sm:$0xff]
    %v41 = vld [vmem:[#allocation2 + $0x20] sm:$0xff]
    %v42 = vld [vmem:[#allocation2 + $0x28] sm:$0xff]
    %v43 = vld [vmem:[#allocation2 + $0x30] sm:$0xff]
    %v44 = vld [vmem:[#allocation2 + $0x38] sm:$0xff]
    %v45 = vld [vmem:[#allocation2 + $0x40] sm:$0xff]
    %v46 = vld [vmem:[#allocation2 + $0x48] sm:$0xff]
    %v47 = vld [vmem:[#allocation2 + $0x50] sm:$0xff]
    %v48 = vld [vmem:[#allocation2 + $0x58] sm:$0xff]
    %v49 = vld [vmem:[#allocation2 + $0x60] sm:$0xff]
    %v50 = vld [vmem:[#allocation2 + $0x68] sm:$0xff]
    %v51 = vld [vmem:[#allocation2 + $0x70] sm:$0xff]
    %v52 = vld [vmem:[#allocation2 + $0x78] sm:$0xff]
    %v53 = vadd.f32 %v37, %v38
    %54 = vadd.xlane.f32.xlu0 %v53
    %v55 = vpop.xlane.xlu0 %54
    %v56 = vadd.f32 %v39, %v40
    %57 = vadd.xlane.f32.xlu0 %v56
    %v58 = vpop.xlane.xlu0 %57
    %v59 = vadd.f32 %v41, %v42
    %60 = vadd.xlane.f32.xlu0 %v59
    %v61 = vpop.xlane.xlu0 %60
    %v62 = vadd.f32 %v43, %v44
    %63 = vadd.xlane.f32.xlu0 %v62
    %v64 = vpop.xlane.xlu0 %63
    %v65 = vadd.f32 %v45, %v46
    %66 = vadd.xlane.f32.xlu0 %v65
    %v67 = vpop.xlane.xlu0 %66
    %v68 = vadd.f32 %v47, %v48
    %69 = vadd.xlane.f32.xlu0 %v68
    %v70 = vpop.xlane.xlu0 %69
    %v71 = vadd.f32 %v49, %v50
    %72 = vadd.xlane.f32.xlu0 %v71
    %v73 = vpop.xlane.xlu0 %72
    %v74 = vadd.f32 %v51, %v52
    %75 = vadd.xlane.f32.xlu0 %v74
    %v76 = vpop.xlane.xlu0 %75
    %v77 = vld [vmem:[%s1] sm:$0xff]
    %v78 = vld [vmem:[%s1 + $0x8] sm:$0xff]
    %v79 = vld [vmem:[%s1 + $0x10] sm:$0xff]
    %v80 = vld [vmem:[%s1 + $0x18] sm:$0xff]
    %v81 = vmul.f32 %v55, %v77
    %v82 = vmul.f32 %v58, %v78
    %v83 = vmul.f32 %v61, %v79
    %v84 = vmul.f32 %v64, %v80
    %v85 = vmul.f32 %v67, %v77
    %v86 = vmul.f32 %v70, %v78
    %v87 = vmul.f32 %v73, %v79
    %v88 = vmul.f32 %v76, %v80
    %vm89 = vcmask 15360
    %v90 = vsel %vm89, %v81, 0.0
    %v91 = vsel %vm89, %v82, 0.0
    %v92 = vadd.f32 %v90, %v91
    %v93 = vsel %vm89, %v83, 0.0
    %v94 = vadd.f32 %v92, %v93
    %v95 = vsel %vm89, %v84, 0.0
    %v96 = vadd.f32 %v94, %v95
    %v97 = vrot.slane %v96, 4
    %v98 = vadd.f32 %v96, %v97
    %v99 = vrot.slane %v98, 2
    %v100 = vadd.f32 %v98, %v99
    %v101 = vrot.slane %v100, 1
    %v102 = vadd.f32 %v100, %v101
    %v103 = vsel %vm89, %v85, 0.0
    %v104 = vsel %vm89, %v86, 0.0
    %v105 = vadd.f32 %v103, %v104
    %v106 = vsel %vm89, %v87, 0.0
    %v107 = vadd.f32 %v105, %v106
    %v108 = vsel %vm89, %v88, 0.0
    %v109 = vadd.f32 %v107, %v108
    %v110 = vrot.slane %v109, 4
    %v111 = vadd.f32 %v109, %v110
    %v112 = vrot.slane %v111, 2
    %v113 = vadd.f32 %v111, %v112
    %v114 = vrot.slane %v113, 1
    %v115 = vadd.f32 %v113, %v114
    %v116 = vld [vmem:[%s2] sm:$0x1]
    %v117 = vadd.f32 %v102, %v116
    %v118 = vadd.f32 %v115, %v116
    %v119 = vmax.f32 %v117, 0.0
    %v120 = vmax.f32 %v118, 0.0
    %v121 = vld [vmem:[%s3] sm:$0xff]
    %v122 = vld [vmem:[%s3 + $0x8] sm:$0xff]
    %v123 = vld [vmem:[%s3 + $0x10] sm:$0xff]
    %v124 = vld [vmem:[%s3 + $0x18] sm:$0xff]
    %v125 = vperm.slane %v119, 0
    %v126 = vperm.slane %v120, 0
    %v127 = vmul.f32 %v121, %v125
    %v128 = vmul.f32 %v122, %v125
    %v129 = vmul.f32 %v123, %v125
    %v130 = vmul.f32 %v124, %v125
    %v131 = vmul.f32 %v121, %v126
    %v132 = vmul.f32 %v122, %v126
    %v133 = vmul.f32 %v123, %v126
    %v134 = vmul.f32 %v124, %v126
    %v135 = vsel %vm89, %v127, 0.0
    %136 = vadd.xlane.f32.xlu0 %v135
    %v137 = vpop.xlane.xlu0 %136
    %v138 = vsel %vm89, %v128, 0.0
    %139 = vadd.xlane.f32.xlu0 %v138
    %v140 = vpop.xlane.xlu0 %139
    %v141 = vsel %vm89, %v129, 0.0
    %142 = vadd.xlane.f32.xlu0 %v141
    %v143 = vpop.xlane.xlu0 %142
    %v144 = vsel %vm89, %v130, 0.0
    %145 = vadd.xlane.f32.xlu0 %v144
    %v146 = vpop.xlane.xlu0 %145
    %v147 = vsel %vm89, %v131, 0.0
    %148 = vadd.xlane.f32.xlu0 %v147
    %v149 = vpop.xlane.xlu0 %148
    %v150 = vsel %vm89, %v132, 0.0
    %151 = vadd.xlane.f32.xlu0 %v150
    %v152 = vpop.xlane.xlu0 %151
    %v153 = vsel %vm89, %v133, 0.0
    %154 = vadd.xlane.f32.xlu0 %v153
    %v155 = vpop.xlane.xlu0 %154
    %v156 = vsel %vm89, %v134, 0.0
    %157 = vadd.xlane.f32.xlu0 %v156
    %v158 = vpop.xlane.xlu0 %157
    %v159 = vld [vmem:[%s4] sm:$0xff]
    %v160 = vld [vmem:[%s4 + $0x8] sm:$0xff]
    %v161 = vld [vmem:[%s4 + $0x10] sm:$0xff]
    %v162 = vld [vmem:[%s4 + $0x18] sm:$0xff]
    %v163 = vadd.f32 %v137, %v159
    %v164 = vadd.f32 %v140, %v160
    %v165 = vadd.f32 %v143, %v161
    %v166 = vadd.f32 %v146, %v162
    %v167 = vadd.f32 %v149, %v159
    %v168 = vadd.f32 %v152, %v160
    %v169 = vadd.f32 %v155, %v161
    %v170 = vadd.f32 %v158, %v162
    %v171 = vxor.u32 %v163, 2147483648
    %v172 = vxor.u32 %v164, 2147483648
    %v173 = vxor.u32 %v165, 2147483648
    %v174 = vxor.u32 %v166, 2147483648
    %v175 = vxor.u32 %v167, 2147483648
    %v176 = vxor.u32 %v168, 2147483648
    %v177 = vxor.u32 %v169, 2147483648
    %v178 = vxor.u32 %v170, 2147483648
    %v179 = vmul.f32 %v171, 1.442695
    %v180 = vpow.pop %v179
    %v181 = vmul.f32 %v172, 1.442695
    %v182 = vpow.pop %v181
    %v183 = vmul.f32 %v173, 1.442695
    %v184 = vpow.pop %v183
    %v185 = vmul.f32 %v174, 1.442695
    %v186 = vpow.pop %v185
    %v187 = vmul.f32 %v175, 1.442695
    %v188 = vpow.pop %v187
    %v189 = vmul.f32 %v176, 1.442695
    %v190 = vpow.pop %v189
    %v191 = vmul.f32 %v177, 1.442695
    %v192 = vpow.pop %v191
    %v193 = vmul.f32 %v178, 1.442695
    %v194 = vpow.pop %v193
    %v195 = vadd.f32 %v180, 1.0
    %v196 = vadd.f32 %v182, 1.0
    %v197 = vadd.f32 %v184, 1.0
    %v198 = vadd.f32 %v186, 1.0
    %v199 = vadd.f32 %v188, 1.0
    %v200 = vadd.f32 %v190, 1.0
    %v201 = vadd.f32 %v192, 1.0
    %v202 = vadd.f32 %v194, 1.0
    %v203 = vrcp.pop %v195
    %v204 = vmul.f32 %v195, %v203
    %v205 = vsub.f32 1.0, %v204
    %v206 = vmul.f32 %v203, %v205
    %v207 = vadd.f32 %v203, %v206
    %vm208 = vweird.f32 %v195
    %vm209 = vweird.f32 %v203
    %vm210 = vmor %vm208, %vm209
    %v211 = vsel %vm210, %v203, %v207
    %v212 = vand.u32 2147483647, %v195
    %vm213 = vcmp.eq.f32.partialorder %v212, 8.507059e+37
    %v214 = vand.u32 %v195, 2147483648
    %v215 = vor.u32 1.1754944e-38, %v214
    %v216 = vsel %vm213, %v215, %v211
    %v217 = vmul.f32 1.0, %v216
    %v218 = vrcp.pop %v196
    %v219 = vmul.f32 %v196, %v218
    %v220 = vsub.f32 1.0, %v219
    %v221 = vmul.f32 %v218, %v220
    %v222 = vadd.f32 %v218, %v221
    %vm223 = vweird.f32 %v196
    %vm224 = vweird.f32 %v218
    %vm225 = vmor %vm223, %vm224
    %v226 = vsel %vm225, %v218, %v222
    %v227 = vand.u32 2147483647, %v196
    %vm228 = vcmp.eq.f32.partialorder %v227, 8.507059e+37
    %v229 = vand.u32 %v196, 2147483648
    %v230 = vor.u32 1.1754944e-38, %v229
    %v231 = vsel %vm228, %v230, %v226
    %v232 = vmul.f32 1.0, %v231
    %v233 = vrcp.pop %v197
    %v234 = vmul.f32 %v197, %v233
    %v235 = vsub.f32 1.0, %v234
    %v236 = vmul.f32 %v233, %v235
    %v237 = vadd.f32 %v233, %v236
    %vm238 = vweird.f32 %v197
    %vm239 = vweird.f32 %v233
    %vm240 = vmor %vm238, %vm239
    %v241 = vsel %vm240, %v233, %v237
    %v242 = vand.u32 2147483647, %v197
    %vm243 = vcmp.eq.f32.partialorder %v242, 8.507059e+37
    %v244 = vand.u32 %v197, 2147483648
    %v245 = vor.u32 1.1754944e-38, %v244
    %v246 = vsel %vm243, %v245, %v241
    %v247 = vmul.f32 1.0, %v246
    %v248 = vrcp.pop %v198
    %v249 = vmul.f32 %v198, %v248
    %v250 = vsub.f32 1.0, %v249
    %v251 = vmul.f32 %v248, %v250
    %v252 = vadd.f32 %v248, %v251
    %vm253 = vweird.f32 %v198
    %vm254 = vweird.f32 %v248
    %vm255 = vmor %vm253, %vm254
    %v256 = vsel %vm255, %v248, %v252
    %v257 = vand.u32 2147483647, %v198
    %vm258 = vcmp.eq.f32.partialorder %v257, 8.507059e+37
    %v259 = vand.u32 %v198, 2147483648
    %v260 = vor.u32 1.1754944e-38, %v259
    %v261 = vsel %vm258, %v260, %v256
    %v262 = vmul.f32 1.0, %v261
    %v263 = vrcp.pop %v199
    %v264 = vmul.f32 %v199, %v263
    %v265 = vsub.f32 1.0, %v264
    %v266 = vmul.f32 %v263, %v265
    %v267 = vadd.f32 %v263, %v266
    %vm268 = vweird.f32 %v199
    %vm269 = vweird.f32 %v263
    %vm270 = vmor %vm268, %vm269
    %v271 = vsel %vm270, %v263, %v267
    %v272 = vand.u32 2147483647, %v199
    %vm273 = vcmp.eq.f32.partialorder %v272, 8.507059e+37
    %v274 = vand.u32 %v199, 2147483648
    %v275 = vor.u32 1.1754944e-38, %v274
    %v276 = vsel %vm273, %v275, %v271
    %v277 = vmul.f32 1.0, %v276
    %v278 = vrcp.pop %v200
    %v279 = vmul.f32 %v200, %v278
    %v280 = vsub.f32 1.0, %v279
    %v281 = vmul.f32 %v278, %v280
    %v282 = vadd.f32 %v278, %v281
    %vm283 = vweird.f32 %v200
    %vm284 = vweird.f32 %v278
    %vm285 = vmor %vm283, %vm284
    %v286 = vsel %vm285, %v278, %v282
    %v287 = vand.u32 2147483647, %v200
    %vm288 = vcmp.eq.f32.partialorder %v287, 8.507059e+37
    %v289 = vand.u32 %v200, 2147483648
    %v290 = vor.u32 1.1754944e-38, %v289
    %v291 = vsel %vm288, %v290, %v286
    %v292 = vmul.f32 1.0, %v291
    %v293 = vrcp.pop %v201
    %v294 = vmul.f32 %v201, %v293
    %v295 = vsub.f32 1.0, %v294
    %v296 = vmul.f32 %v293, %v295
    %v297 = vadd.f32 %v293, %v296
    %vm298 = vweird.f32 %v201
    %vm299 = vweird.f32 %v293
    %vm300 = vmor %vm298, %vm299
    %v301 = vsel %vm300, %v293, %v297
    %v302 = vand.u32 2147483647, %v201
    %vm303 = vcmp.eq.f32.partialorder %v302, 8.507059e+37
    %v304 = vand.u32 %v201, 2147483648
    %v305 = vor.u32 1.1754944e-38, %v304
    %v306 = vsel %vm303, %v305, %v301
    %v307 = vmul.f32 1.0, %v306
    %v308 = vrcp.pop %v202
    %v309 = vmul.f32 %v202, %v308
    %v310 = vsub.f32 1.0, %v309
    %v311 = vmul.f32 %v308, %v310
    %v312 = vadd.f32 %v308, %v311
    %vm313 = vweird.f32 %v202
    %vm314 = vweird.f32 %v308
    %vm315 = vmor %vm313, %vm314
    %v316 = vsel %vm315, %v308, %v312
    %v317 = vand.u32 2147483647, %v202
    %vm318 = vcmp.eq.f32.partialorder %v317, 8.507059e+37
    %v319 = vand.u32 %v202, 2147483648
    %v320 = vor.u32 1.1754944e-38, %v319
    %v321 = vsel %vm318, %v320, %v316
    %v322 = vmul.f32 1.0, %v321
    %324 = vset.pattern.permute.xlu0 0
    %325 = vperm.xlu0 %324, %v217
    %v326 = vpop.permute.xlu0 %325
    %329 = vset.pattern.permute.xlu0 0
    %330 = vperm.xlu0 %329, %v232
    %v331 = vpop.permute.xlu0 %330
    %334 = vset.pattern.permute.xlu0 0
    %335 = vperm.xlu0 %334, %v247
    %v336 = vpop.permute.xlu0 %335
    %339 = vset.pattern.permute.xlu0 0
    %340 = vperm.xlu0 %339, %v262
    %v341 = vpop.permute.xlu0 %340
    %344 = vset.pattern.permute.xlu0 0
    %345 = vperm.xlu0 %344, %v277
    %v346 = vpop.permute.xlu0 %345
    %349 = vset.pattern.permute.xlu0 0
    %350 = vperm.xlu0 %349, %v292
    %v351 = vpop.permute.xlu0 %350
    %354 = vset.pattern.permute.xlu0 0
    %355 = vperm.xlu0 %354, %v307
    %v356 = vpop.permute.xlu0 %355
    %359 = vset.pattern.permute.xlu0 0
    %360 = vperm.xlu0 %359, %v322
    %v361 = vpop.permute.xlu0 %360
    %v363 = vmul.f32 %v37, %v326
    %v364 = vmul.f32 %v38, %v326
    %v365 = vmul.f32 %v39, %v331
    %v366 = vmul.f32 %v40, %v331
    %v367 = vmul.f32 %v41, %v336
    %v368 = vmul.f32 %v42, %v336
    %v369 = vmul.f32 %v43, %v341
    %v370 = vmul.f32 %v44, %v341
    %v371 = vmul.f32 %v45, %v346
    %v372 = vmul.f32 %v46, %v346
    %v373 = vmul.f32 %v47, %v351
    %v374 = vmul.f32 %v48, %v351
    %v375 = vmul.f32 %v49, %v356
    %v376 = vmul.f32 %v50, %v356
    %v377 = vmul.f32 %v51, %v361
    %v378 = vmul.f32 %v52, %v361
    %379 = vst [vmem:[#allocation5] sm:$0xff] %v363
    %380 = vst [vmem:[#allocation5 + $0x8] sm:$0xff] %v364
    %381 = vst [vmem:[#allocation5 + $0x10] sm:$0xff] %v365
    %382 = vst [vmem:[#allocation5 + $0x18] sm:$0xff] %v366
    %383 = vst [vmem:[#allocation5 + $0x20] sm:$0xff] %v367
    %384 = vst [vmem:[#allocation5 + $0x28] sm:$0xff] %v368
    %385 = vst [vmem:[#allocation5 + $0x30] sm:$0xff] %v369
    %386 = vst [vmem:[#allocation5 + $0x38] sm:$0xff] %v370
    %387 = vst [vmem:[#allocation5 + $0x40] sm:$0xff] %v371
    %388 = vst [vmem:[#allocation5 + $0x48] sm:$0xff] %v372
    %389 = vst [vmem:[#allocation5 + $0x50] sm:$0xff] %v373
    %390 = vst [vmem:[#allocation5 + $0x58] sm:$0xff] %v374
    %391 = vst [vmem:[#allocation5 + $0x60] sm:$0xff] %v375
    %392 = vst [vmem:[#allocation5 + $0x68] sm:$0xff] %v376
    %393 = vst [vmem:[#allocation5 + $0x70] sm:$0xff] %v377
    %394 = vst [vmem:[#allocation5 + $0x78] sm:$0xff] %v378
    // Predicated region
    $region26: #{tpu_custom_call.1} parent=1 // pred_check
      _
    $region27: #{tpu_custom_call.1} parent=1 // pred_check_branch
      %396 = sbr.rel (0) target = $region29
    $region28: #{tpu_custom_call.1} parent=1 // pred_region
      %398 = vsyncadd [#allocation4], 0
      %s399 = sshll.u32 [#allocation5], 4
      %s400 = int_to_ptr.vmem [resolvable:$true] %s399
      %s401 = sshll.u32 %s5, 4
      %s402 = int_to_ptr.hbm [resolvable:$true] %s401
      %407 = dma.vmem_to_hbm [thread:$0]  %s400, 2048, %s402, [#allocation4], 256, 256, 16
    $region29: #{tpu_custom_call.1} parent=1 // pred_fallthru
      _
    // Predicated region
    $region30: #{tpu_custom_call.1} parent=1 // pred_check
      _
    $region31: #{tpu_custom_call.1} parent=1 // pred_check_branch
      %409 = sbr.rel (0) target = $region33
    $region32: #{tpu_custom_call.1} parent=1 // pred_region
      %411 = dma.done [#allocation4], 2048
    $region33: #{tpu_custom_call.1} parent=1 // pred_fallthru
      _
    %412 = vsyncpa [#allocation3], 1
    %413 = vsyncpa [#allocation4], 1

</llo_original>
